<compile_context>
chip_gen: v7x
topology: tpu7x:2x2x1
jax: 0.10.0
libtpu: 0.0.40
codegen_flags: <defaults>
</compile_context>

<pallas_src>
import jax
import jax.numpy as jnp
from jax.experimental import pallas as pl
from jax.experimental.pallas import tpu as pltpu


def _make_identity_dma_kernel(num_chunks: int):
    """Kernel that copies `num_chunks` HBM row-slices input->output via DMA."""

    def kernel(x_hbm_ref, o_hbm_ref, sems):
        copies = []
        # Issue every DMA first (overlap descriptor issue + transfers) ...
        for c in range(num_chunks):
            cp = pltpu.make_async_copy(x_hbm_ref.at[c], o_hbm_ref.at[c], sems.at[c])
            cp.start()
            copies.append(cp)
        # ... then wait for all of them.
        for cp in copies:
            cp.wait()

    return kernel


def _identity_copy(x: jax.Array) -> jax.Array:
    """Materializing identity: one (or a few) direct HBM->HBM DMA copies."""
    orig_shape = x.shape
    dtype = x.dtype
    n = x.size
    if n == 0:
        return x

    itemsize = jnp.dtype(dtype).itemsize

    # Split into a handful of equal chunks when possible so DMAs overlap.
    num_chunks = 1
    for c in (4, 2):
        if n % c == 0 and (n // c) * itemsize >= 4096:
            num_chunks = c
            break

    chunk_len = n // num_chunks
    x2 = x.reshape(num_chunks, chunk_len)

    out2 = pl.pallas_call(
        _make_identity_dma_kernel(num_chunks),
        out_shape=jax.ShapeDtypeStruct((num_chunks, chunk_len), dtype),
        in_specs=[pl.BlockSpec(memory_space=pl.ANY)],
        out_specs=pl.BlockSpec(memory_space=pl.ANY),
        scratch_shapes=[pltpu.SemaphoreType.DMA((num_chunks,))],
        cost_estimate=pl.CostEstimate(
            flops=0,
            transcendentals=0,
            bytes_accessed=int(2 * n * itemsize),
        ),
    )(x2)
    return out2.reshape(orig_shape)


def identity(x: jax.Array, materialize: bool = False) -> jax.Array:
    """Identity forward pass.

    materialize=False (default): returns x unchanged — the optimal
    implementation of nn.Identity (zero HBM traffic, no kernel launch).
    materialize=True: runs the Pallas HBM->HBM DMA copy and returns a fresh
    array with identical contents.
    """
    if not materialize:
        return x
    return _identity_copy(x)


if __name__ == "__main__":
    key = jax.random.PRNGKey(0)
    # Small NCHW input consistent with a generic conv-style module input.
    x = jax.random.normal(key, (2, 4, 16, 16), dtype=jnp.float32)

    # Fast path: the module's true semantics — no kernel launch at all.
    y_fast = identity(x)
    assert y_fast is x  # holds eagerly; inside jit it would be a traced value

    # Kernel path: force the Pallas HBM->HBM DMA copy to compile and run.
    y = identity(x, materialize=True)
    y = jax.block_until_ready(y)

    assert y.shape == x.shape, (y.shape, x.shape)
    assert y.dtype == x.dtype, (y.dtype, x.dtype)
    assert bool(jnp.all(y == x)), "identity output mismatch"

    print("KERNEL_OK")
</pallas_src>

<mosaic_0001>
module attributes {stable_mosaic.version = 11 : i64} {
  func.func @kernel(%arg0: memref<2x1024xf32, #tpu.memory_space<any>>, %arg1: memref<2x1024xf32, #tpu.memory_space<any>>, %arg2: memref<2x!tpu.dma_semaphore, #tpu.memory_space<semaphore_mem>>) attributes {dimension_semantics = [], scalar_prefetch = 0 : i64, scratch_operands = 1 : i64, tpu.core_type = #tpu.core_type<tc>} {
    %c0_i32 = arith.constant 0 : i32
    %c0_i32_0 = arith.constant 0 : i32
    %c0_i32_1 = arith.constant 0 : i32
    %c0_i32_2 = arith.constant 0 : i32
    %0 = tpu.memref_slice %arg0[%c0_i32, %c0_i32_2] : memref<2x1024xf32, #tpu.memory_space<any>> -> memref<1x1024xf32, #tpu.memory_space<any>>
    %1 = tpu.memref_squeeze %0 : memref<1x1024xf32, #tpu.memory_space<any>> -> memref<1024xf32, #tpu.memory_space<any>>
    %c0_i32_3 = arith.constant 0 : i32
    %2 = tpu.memref_slice %arg1[%c0_i32_0, %c0_i32_3] : memref<2x1024xf32, #tpu.memory_space<any>> -> memref<1x1024xf32, #tpu.memory_space<any>>
    %3 = tpu.memref_squeeze %2 : memref<1x1024xf32, #tpu.memory_space<any>> -> memref<1024xf32, #tpu.memory_space<any>>
    %4 = tpu.memref_slice %arg2[%c0_i32_1] : memref<2x!tpu.dma_semaphore, #tpu.memory_space<semaphore_mem>> -> memref<1x!tpu.dma_semaphore, #tpu.memory_space<semaphore_mem>>
    %5 = tpu.memref_squeeze %4 : memref<1x!tpu.dma_semaphore, #tpu.memory_space<semaphore_mem>> -> memref<!tpu.dma_semaphore, #tpu.memory_space<semaphore_mem>>
    tpu.enqueue_dma source(%1 : memref<1024xf32, #tpu.memory_space<any>>) target(%3 : memref<1024xf32, #tpu.memory_space<any>>) target_semaphore(%5 : memref<!tpu.dma_semaphore, #tpu.memory_space<semaphore_mem>>)
    %c1_i32 = arith.constant 1 : i32
    %c1_i32_4 = arith.constant 1 : i32
    %c1_i32_5 = arith.constant 1 : i32
    %c0_i32_6 = arith.constant 0 : i32
    %6 = tpu.memref_slice %arg0[%c1_i32, %c0_i32_6] : memref<2x1024xf32, #tpu.memory_space<any>> -> memref<1x1024xf32, #tpu.memory_space<any>>
    %7 = tpu.memref_squeeze %6 : memref<1x1024xf32, #tpu.memory_space<any>> -> memref<1024xf32, #tpu.memory_space<any>>
    %c0_i32_7 = arith.constant 0 : i32
    %8 = tpu.memref_slice %arg1[%c1_i32_4, %c0_i32_7] : memref<2x1024xf32, #tpu.memory_space<any>> -> memref<1x1024xf32, #tpu.memory_space<any>>
    %9 = tpu.memref_squeeze %8 : memref<1x1024xf32, #tpu.memory_space<any>> -> memref<1024xf32, #tpu.memory_space<any>>
    %10 = tpu.memref_slice %arg2[%c1_i32_5] : memref<2x!tpu.dma_semaphore, #tpu.memory_space<semaphore_mem>> -> memref<1x!tpu.dma_semaphore, #tpu.memory_space<semaphore_mem>>
    %11 = tpu.memref_squeeze %10 : memref<1x!tpu.dma_semaphore, #tpu.memory_space<semaphore_mem>> -> memref<!tpu.dma_semaphore, #tpu.memory_space<semaphore_mem>>
    tpu.enqueue_dma source(%7 : memref<1024xf32, #tpu.memory_space<any>>) target(%9 : memref<1024xf32, #tpu.memory_space<any>>) target_semaphore(%11 : memref<!tpu.dma_semaphore, #tpu.memory_space<semaphore_mem>>)
    %c0_i32_8 = arith.constant 0 : i32
    %c0_i32_9 = arith.constant 0 : i32
    %c0_i32_10 = arith.constant 0 : i32
    %c0_i32_11 = arith.constant 0 : i32
    %12 = tpu.memref_slice %arg0[%c0_i32_8, %c0_i32_11] : memref<2x1024xf32, #tpu.memory_space<any>> -> memref<1x1024xf32, #tpu.memory_space<any>>
    %13 = tpu.memref_squeeze %12 : memref<1x1024xf32, #tpu.memory_space<any>> -> memref<1024xf32, #tpu.memory_space<any>>
    %c0_i32_12 = arith.constant 0 : i32
    %14 = tpu.memref_slice %arg1[%c0_i32_9, %c0_i32_12] : memref<2x1024xf32, #tpu.memory_space<any>> -> memref<1x1024xf32, #tpu.memory_space<any>>
    %15 = tpu.memref_squeeze %14 : memref<1x1024xf32, #tpu.memory_space<any>> -> memref<1024xf32, #tpu.memory_space<any>>
    %16 = tpu.memref_slice %arg2[%c0_i32_10] : memref<2x!tpu.dma_semaphore, #tpu.memory_space<semaphore_mem>> -> memref<1x!tpu.dma_semaphore, #tpu.memory_space<semaphore_mem>>
    %17 = tpu.memref_squeeze %16 : memref<1x!tpu.dma_semaphore, #tpu.memory_space<semaphore_mem>> -> memref<!tpu.dma_semaphore, #tpu.memory_space<semaphore_mem>>
    tpu.wait_dma2 semaphore(%17 : memref<!tpu.dma_semaphore, #tpu.memory_space<semaphore_mem>>) src(%13 : memref<1024xf32, #tpu.memory_space<any>>) dst(%15 : memref<1024xf32, #tpu.memory_space<any>>)
    %c1_i32_13 = arith.constant 1 : i32
    %c1_i32_14 = arith.constant 1 : i32
    %c1_i32_15 = arith.constant 1 : i32
    %c0_i32_16 = arith.constant 0 : i32
    %18 = tpu.memref_slice %arg0[%c1_i32_13, %c0_i32_16] : memref<2x1024xf32, #tpu.memory_space<any>> -> memref<1x1024xf32, #tpu.memory_space<any>>
    %19 = tpu.memref_squeeze %18 : memref<1x1024xf32, #tpu.memory_space<any>> -> memref<1024xf32, #tpu.memory_space<any>>
    %c0_i32_17 = arith.constant 0 : i32
    %20 = tpu.memref_slice %arg1[%c1_i32_14, %c0_i32_17] : memref<2x1024xf32, #tpu.memory_space<any>> -> memref<1x1024xf32, #tpu.memory_space<any>>
    %21 = tpu.memref_squeeze %20 : memref<1x1024xf32, #tpu.memory_space<any>> -> memref<1024xf32, #tpu.memory_space<any>>
    %22 = tpu.memref_slice %arg2[%c1_i32_15] : memref<2x!tpu.dma_semaphore, #tpu.memory_space<semaphore_mem>> -> memref<1x!tpu.dma_semaphore, #tpu.memory_space<semaphore_mem>>
    %23 = tpu.memref_squeeze %22 : memref<1x!tpu.dma_semaphore, #tpu.memory_space<semaphore_mem>> -> memref<!tpu.dma_semaphore, #tpu.memory_space<semaphore_mem>>
    tpu.wait_dma2 semaphore(%23 : memref<!tpu.dma_semaphore, #tpu.memory_space<semaphore_mem>>) src(%19 : memref<1024xf32, #tpu.memory_space<any>>) dst(%21 : memref<1024xf32, #tpu.memory_space<any>>)
    return
  }
}

</mosaic_0001>

<llo_original>
// kernel: tpu_custom_call.1
$region0: #{tpu_custom_call.1}
  #allocation0 [shape = 'u32[]', space=smem, size = 0x4, offset = 0x4, fixed_abs, tag = 'smem constant byte address 0x4 - core index']
  #allocation1 [shape = 'u32[144,128]{1,0:T(1,128)}', space=vmem, size = 0x12000, scoped, tag = 'internal scratch']
  #allocation2 [shape = 's32[2]{0}', space=sflag, size = 0x8, scoped, tag = 'scratch operand']
  #allocation3 [shape = 's32[]', space=sflag, size = 0x4, offset = 0, fixed_abs, tag = 'sflag constant byte address 0x0 - dummy sync flag']
  #allocation5 [shape = 's32[]', space=sflag, size = 0x4, offset = 0, fixed_abs, tag = 'sflag constant byte address 0x0 - dummy sync flag']
  %s0 = inlined_call_operand.hbm [shape: f32[2,1024], index: 0, kind: input, shape index: {}]
  %s1 = inlined_call_operand.hbm [shape: f32[2,1024], index: 1, kind: output, shape index: {}]
  %s2 = sld [smem:[#allocation0]]
  $region2: #{tpu_custom_call.1} parent=0
    _
  %s4 = ssub.s32 1, %s2
  %s5 = scalar_select 0, %s4, %s2
  $region1: #{tpu_custom_call.1} parent=0
    #allocation4 [shape = 'u32[3]{0}', space=smem, size = 0xc, scoped, tag = 'DMA stride descriptor']
    #allocation6 [shape = 'u32[3]{0}', space=smem, size = 0xc, scoped, tag = 'DMA stride descriptor']
    %s7 = sshll.u32 1, 14
    %s8 = sxor.u32 4294967295, %s7
    %s11 = sshll.u32 3, 24
    %s12 = sxor.u32 4294967295, %s11
    %s13 = sand.u32 0, %s12
    %s15 = sor.u32 %s13, 0
    %18 = sst [smem:[#allocation4]] 32
    %s19 = scalar_lea.smem [#allocation4], 1
    %20 = sst [smem:[%s19]] 32
    %s21 = scalar_lea.smem [#allocation4], 2
    %22 = sst [smem:[%s21]] 1
    %24 = dma.general %s0, 128, %s1, [#allocation2], [#allocation3], [#allocation4], %s15, 0
    %s25 = scalar_lea.hbm %s0, 16
    %s26 = scalar_lea.hbm %s1, 16
    %s27 = scalar_lea.sflag [#allocation2], 1
    %s29 = sshll.u32 1, 14
    %s30 = sxor.u32 4294967295, %s29
    %s33 = sshll.u32 3, 24
    %s34 = sxor.u32 4294967295, %s33
    %s35 = sand.u32 0, %s34
    %s37 = sor.u32 %s35, 0
    %40 = sst [smem:[#allocation6]] 32
    %s41 = scalar_lea.smem [#allocation6], 1
    %42 = sst [smem:[%s41]] 32
    %s43 = scalar_lea.smem [#allocation6], 2
    %44 = sst [smem:[%s43]] 1
    %46 = dma.general %s25, 128, %s26, %s27, [#allocation5], [#allocation6], %s37, 0
    %48 = dma.done [#allocation2], 128
    %50 = dma.done %s27, 128
  %51 = vsyncmov [#allocation2]
  %s52 = vpop.sfrf %51
  %p53 = scmp.eq.s32.totalorder %s52, 0
  %p54 = pneg %p53
  %56 = shalt.err (%p54)
  %s57 = scalar_lea.sflag [#allocation2], 1
  %58 = vsyncmov %s57
  %s59 = vpop.sfrf %58
  %p60 = scmp.eq.s32.totalorder %s59, 0
  %p61 = pneg %p60
  %63 = shalt.err (%p61)

</llo_original>
